<compile_context>
chip_gen: v5e
topology: v5e:2x2
jax: 0.10.0
libtpu: 0.0.40
codegen_flags: <defaults>
</compile_context>

<pallas_src>
import numpy as np

import jax
import jax.numpy as jnp
from jax import lax
from jax.experimental import pallas as pl
from jax.experimental.pallas import tpu as pltpu

LN_EPS = 1e-5
_INV_SQRT2 = 0.7071067811865476
_SQRT_2_OVER_PI = 0.7978845608028654


def _make_kernel(approximate_gelu):
    def projection_head_kernel(x_ref, w1_ref, w2_ref, params_ref, o_ref):
        # In-kernel cast to bf16 (cheap VPU op) right before the MXU feed.
        x = x_ref[...].astype(w1_ref.dtype)

        # projection: x @ W1 + b1  -- bf16 operands, f32 accumulation (MXU).
        prm = params_ref[...]                       # (4, P) f32: b1, b2, gamma, beta
        projected = jnp.dot(x, w1_ref[...], preferred_element_type=jnp.float32)
        projected = projected + prm[0:1, :]

        if approximate_gelu:
            # tanh-approx GELU: tanh goes to the EUP slot, leaving only a few
            # VALU ops per element (exact erf is a ~20-op VALU polynomial).
            c = jnp.float32(_SQRT_2_OVER_PI)
            inner = c * (projected + jnp.float32(0.044715)
                         * projected * projected * projected)
            h = 0.5 * projected * (1.0 + jnp.tanh(inner))
        else:
            # Exact (erf) GELU, bit-matching nn.GELU() default (slower: VALU-bound).
            h = 0.5 * projected * (1.0 + lax.erf(projected * jnp.float32(_INV_SQRT2)))

        # fc: h @ W2 + b2 -- cast activations back to bf16 for full-rate MXU.
        h = jnp.dot(h.astype(w2_ref.dtype), w2_ref[...],
                    preferred_element_type=jnp.float32)
        # bias + residual (dropout is identity at inference).
        h = h + prm[1:2, :] + projected

        # LayerNorm over the last dim, single-pass stats (sum and sum-of-squares).
        p = h.shape[-1]
        inv_p = jnp.float32(1.0 / p)
        s = jnp.sum(h, axis=-1, keepdims=True)
        ss = jnp.sum(h * h, axis=-1, keepdims=True)
        mean = s * inv_p
        var = jnp.maximum(ss * inv_p - mean * mean, 0.0)
        inv = lax.rsqrt(var + jnp.float32(LN_EPS))
        out = (h - mean) * inv
        out = out * prm[2:3, :] + prm[3:4, :]

        o_ref[...] = out.astype(o_ref.dtype)

    return projection_head_kernel


def _round_up(a, m):
    return ((a + m - 1) // m) * m


def _tpu_vmem_bytes():
    """Physical VMEM per TensorCore (64 MiB on v7x, 128 MiB on v5e/v6e)."""
    try:
        info = pltpu.get_tpu_info()
        cap = getattr(info, "vmem_capacity_bytes", None)
        if cap:
            return int(cap)
    except Exception:
        pass
    return 64 * 1024 * 1024  # conservative default (v7x-sized)


def _pick_block_b(batch, requested, min_steps=4):
    """Batch tile: as large as possible (MXU-full, low per-step overhead) while
    (a) keeping bb a multiple of 16 (dense bf16 sublane packing) and
    (b) giving >= min_steps grid steps when the batch allows it (v7x: 2 TCs,
        each needs >= 2 steps for double-buffered pipelining)."""
    if batch <= 16:
        return batch                      # single block == full array (allowed)
    bb = max(16, min(requested, (batch // 16) * 16))
    if pl.cdiv(batch, bb) < min_steps and batch >= 16 * min_steps:
        bb = max(16, _round_up(pl.cdiv(batch, min_steps), 16))
    return bb


def projection_head(x, w1, b1, w2, b2, gamma, beta, *,
                    block_b=None, mxu_dtype=jnp.bfloat16, approximate_gelu=True):
    """Fused ProjectionHead forward.

    x:  (B, E) activations (kept in native dtype; cast to bf16 inside the kernel).
    w1: (E, P), w2: (P, P)  -- already transposed vs. the PyTorch layout.
    b1, b2, gamma, beta: (P,).
    """
    B, E = x.shape
    P = w1.shape[1]
    out_dtype = x.dtype

    vmem_cap = _tpu_vmem_bytes()
    small_vmem = vmem_cap <= 96 * 1024 * 1024          # v7x-like (64 MiB/TC)
    if block_b is None:
        block_b = 256 if small_vmem else 512

    bb = _pick_block_b(B, block_b)
    grid = (pl.cdiv(B, bb),)                            # ragged last block OK

    # Weights pre-cast to bf16 (full MXU rate, half the weight DMA bytes);
    # small per-channel params packed into one (4, P) f32 operand.
    w1_c = w1.astype(mxu_dtype)
    w2_c = w2.astype(mxu_dtype)
    params = jnp.concatenate(
        [b1.reshape(1, P), b2.reshape(1, P),
         gamma.reshape(1, P), beta.reshape(1, P)], axis=0).astype(jnp.float32)

    # VMEM budget (x tile now in its native dtype).  Only raise the scoped
    # limit when the default would be tight (16 MiB on v5e); keep >=16 MiB
    # headroom under physical VMEM for Mosaic internal scratch / pipelining.
    wb = np.dtype(mxu_dtype).itemsize
    est = (2 * bb * E * np.dtype(x.dtype).itemsize        # x tile, double-buffered
           + 2 * bb * P * np.dtype(out_dtype).itemsize    # out tile, double-buffered
           + 2 * ((E + P) * P * wb + 4 * P * 4)           # resident W1/W2 + params
           + 6 * bb * P * 4)                              # f32 intermediates headroom
    vmem_limit = None
    if est > 12 * 1024 * 1024:
        cap = max(32 * 1024 * 1024, vmem_cap - 16 * 1024 * 1024)
        vmem_limit = min(_round_up(int(est * 1.25), 1 << 20), cap)

    kernel = _make_kernel(approximate_gelu)

    return pl.pallas_call(
        kernel,
        out_shape=jax.ShapeDtypeStruct((B, P), out_dtype),
        grid_spec=pltpu.PrefetchScalarGridSpec(
            num_scalar_prefetch=0,
            grid=grid,
            in_specs=[
                pl.BlockSpec((bb, E), lambda i: (i, 0)),   # x tile (native dtype)
                pl.BlockSpec((E, P), lambda i: (0, 0)),    # W1 (resident)
                pl.BlockSpec((P, P), lambda i: (0, 0)),    # W2 (resident)
                pl.BlockSpec((4, P), lambda i: (0, 0)),    # b1/b2/gamma/beta packed
            ],
            out_specs=pl.BlockSpec((bb, P), lambda i: (i, 0)),
        ),
        compiler_params=pltpu.CompilerParams(
            dimension_semantics=("parallel",),
            vmem_limit_bytes=vmem_limit),
    )(x, w1_c, w2_c, params)


def reference_forward(x, w1, b1, w2, b2, gamma, beta,
                      mxu_dtype=None, approximate_gelu=False):
    """Pure-JAX reference.  mxu_dtype=jnp.bfloat16 + approximate_gelu=True
    mirrors the kernel's numerics; defaults are the exact-f32 PyTorch path."""
    def cast(a):
        if mxu_dtype is not None:
            return a.astype(mxu_dtype).astype(jnp.float32)
        return a.astype(jnp.float32)

    projected = cast(x) @ cast(w1) + b1
    h = jax.nn.gelu(projected, approximate=approximate_gelu)
    h = cast(h) @ cast(w2) + b2
    h = h + projected
    mean = jnp.mean(h, axis=-1, keepdims=True)
    var = jnp.mean((h - mean) ** 2, axis=-1, keepdims=True)
    return ((h - mean) / jnp.sqrt(var + LN_EPS)) * gamma + beta


if __name__ == "__main__":
    # Small, module-consistent shapes: batch=8, embedding_dim=512, projection_dim=256.
    B, E, P = 8, 512, 256

    key = jax.random.PRNGKey(0)
    kx, k1, k2, k3, k4 = jax.random.split(key, 5)

    x = jax.random.normal(kx, (B, E), dtype=jnp.float32)

    # Deterministic parameter init (PyTorch-Linear-style uniform bounds).
    bound1 = 1.0 / jnp.sqrt(E)
    w1 = jax.random.uniform(k1, (E, P), minval=-bound1, maxval=bound1, dtype=jnp.float32)
    b1 = jax.random.uniform(k2, (P,), minval=-bound1, maxval=bound1, dtype=jnp.float32)
    bound2 = 1.0 / jnp.sqrt(P)
    w2 = jax.random.uniform(k3, (P, P), minval=-bound2, maxval=bound2, dtype=jnp.float32)
    b2 = jax.random.uniform(k4, (P,), minval=-bound2, maxval=bound2, dtype=jnp.float32)
    gamma = jnp.ones((P,), dtype=jnp.float32)
    beta = jnp.zeros((P,), dtype=jnp.float32)

    out = projection_head(x, w1, b1, w2, b2, gamma, beta)
    out = jax.block_until_ready(out)
    assert out.shape == (B, P)

    # Tight check vs. a reference mirroring the kernel (bf16 MXU operands, tanh GELU).
    ref_bf16 = reference_forward(x, w1, b1, w2, b2, gamma, beta,
                                 mxu_dtype=jnp.bfloat16, approximate_gelu=True)
    err_b = float(jnp.max(jnp.abs(out - ref_bf16)))
    assert jnp.allclose(out, ref_bf16, atol=5e-3, rtol=5e-3), err_b

    # Loose check vs. the exact f32 (PyTorch erf-GELU) reference.
    # TODO(synk): pass approximate_gelu=False for bit-level erf-GELU parity (slower).
    ref_f32 = reference_forward(x, w1, b1, w2, b2, gamma, beta)
    err_f = float(jnp.max(jnp.abs(out - ref_f32)))
    assert jnp.allclose(out, ref_f32, atol=6e-2, rtol=6e-2), err_f

    print("KERNEL_OK")
</pallas_src>

<mosaic_0001>
module attributes {stable_mosaic.version = 11 : i64} {
  func.func @projection_head_kernel(%arg0: i32, %arg1: memref<8x512xf32, #tpu.memory_space<vmem>>, %arg2: memref<512x256xbf16, #tpu.memory_space<vmem>>, %arg3: memref<256x256xbf16, #tpu.memory_space<vmem>>, %arg4: memref<4x256xf32, #tpu.memory_space<vmem>>, %arg5: memref<8x256xf32, #tpu.memory_space<vmem>>) attributes {dimension_semantics = [#tpu.dimension_semantics<parallel>], iteration_bounds = array<i64: 1>, scalar_prefetch = 0 : i64, scratch_operands = 0 : i64, tpu.core_type = #tpu.core_type<tc>, window_params = [{transform_indices = @transform_0, window_bounds = array<i64: 8, 512>}, {pipeline_mode = #tpu.pipeline_mode<synchronous>, transform_indices = @transform_1, window_bounds = array<i64: 512, 256>}, {pipeline_mode = #tpu.pipeline_mode<synchronous>, transform_indices = @transform_2, window_bounds = array<i64: 256, 256>}, {pipeline_mode = #tpu.pipeline_mode<synchronous>, transform_indices = @transform_3, window_bounds = array<i64: 4, 256>}, {transform_indices = @transform_4, window_bounds = array<i64: 8, 256>}]} {
    %c0 = arith.constant 0 : index
    %c0_0 = arith.constant 0 : index
    %0 = vector.load %arg1[%c0, %c0_0] : memref<8x512xf32, #tpu.memory_space<vmem>>, vector<8x512xf32>
    %1 = arith.truncf %0 : vector<8x512xf32> to vector<8x512xbf16>
    %c0_1 = arith.constant 0 : index
    %c0_2 = arith.constant 0 : index
    %2 = vector.load %arg4[%c0_1, %c0_2] : memref<4x256xf32, #tpu.memory_space<vmem>>, vector<4x256xf32>
    %c0_3 = arith.constant 0 : index
    %c0_4 = arith.constant 0 : index
    %3 = vector.load %arg2[%c0_3, %c0_4] : memref<512x256xbf16, #tpu.memory_space<vmem>>, vector<512x256xbf16>
    %cst = arith.constant dense<0.000000e+00> : vector<8x256xf32>
    %4 = tpu.matmul %1, %3, %cst {dimension_numbers = #tpu.dot_dimension_numbers<[1], [0], [0], [1], [0, 0, 1, 1], [], []>} : vector<8x512xbf16>, vector<512x256xbf16>, vector<8x256xf32> -> vector<8x256xf32>
    %5 = vector.extract_strided_slice %2 {offsets = [0, 0], sizes = [1, 256], strides = [1, 1]} : vector<4x256xf32> to vector<1x256xf32>
    %6 = vector.broadcast %5 : vector<1x256xf32> to vector<8x256xf32>
    %7 = arith.addf %4, %6 : vector<8x256xf32>
    %cst_5 = arith.constant 4.471500e-02 : f32
    %8 = vector.broadcast %cst_5 : f32 to vector<8x256xf32>
    %9 = arith.mulf %8, %7 : vector<8x256xf32>
    %10 = arith.mulf %9, %7 : vector<8x256xf32>
    %11 = arith.mulf %10, %7 : vector<8x256xf32>
    %12 = arith.addf %7, %11 : vector<8x256xf32>
    %cst_6 = arith.constant 0.797884583 : f32
    %13 = vector.broadcast %cst_6 : f32 to vector<8x256xf32>
    %14 = arith.mulf %13, %12 : vector<8x256xf32>
    %cst_7 = arith.constant 5.000000e-01 : f32
    %15 = vector.broadcast %cst_7 : f32 to vector<8x256xf32>
    %16 = arith.mulf %15, %7 : vector<8x256xf32>
    %17 = math.tanh %14 : vector<8x256xf32>
    %cst_8 = arith.constant 1.000000e+00 : f32
    %18 = vector.broadcast %cst_8 : f32 to vector<8x256xf32>
    %19 = arith.addf %18, %17 : vector<8x256xf32>
    %20 = arith.mulf %16, %19 : vector<8x256xf32>
    %21 = arith.truncf %20 : vector<8x256xf32> to vector<8x256xbf16>
    %c0_9 = arith.constant 0 : index
    %c0_10 = arith.constant 0 : index
    %22 = vector.load %arg3[%c0_9, %c0_10] : memref<256x256xbf16, #tpu.memory_space<vmem>>, vector<256x256xbf16>
    %cst_11 = arith.constant dense<0.000000e+00> : vector<8x256xf32>
    %23 = tpu.matmul %21, %22, %cst_11 {dimension_numbers = #tpu.dot_dimension_numbers<[1], [0], [0], [1], [0, 0, 1, 1], [], []>} : vector<8x256xbf16>, vector<256x256xbf16>, vector<8x256xf32> -> vector<8x256xf32>
    %24 = vector.extract_strided_slice %2 {offsets = [1, 0], sizes = [1, 256], strides = [1, 1]} : vector<4x256xf32> to vector<1x256xf32>
    %25 = vector.broadcast %24 : vector<1x256xf32> to vector<8x256xf32>
    %26 = arith.addf %23, %25 : vector<8x256xf32>
    %27 = arith.addf %26, %7 : vector<8x256xf32>
    %cst_12 = arith.constant dense<0.000000e+00> : vector<8xf32>
    %28 = vector.multi_reduction <add>, %27, %cst_12 [1] : vector<8x256xf32> to vector<8xf32>
    %29 = vector.shape_cast %28 : vector<8xf32> to vector<8x1xf32>
    %30 = arith.mulf %27, %27 : vector<8x256xf32>
    %cst_13 = arith.constant dense<0.000000e+00> : vector<8xf32>
    %31 = vector.multi_reduction <add>, %30, %cst_13 [1] : vector<8x256xf32> to vector<8xf32>
    %32 = vector.shape_cast %31 : vector<8xf32> to vector<8x1xf32>
    %cst_14 = arith.constant 3.906250e-03 : f32
    %33 = vector.broadcast %cst_14 : f32 to vector<8x1xf32>
    %34 = arith.mulf %29, %33 : vector<8x1xf32>
    %cst_15 = arith.constant 3.906250e-03 : f32
    %35 = vector.broadcast %cst_15 : f32 to vector<8x1xf32>
    %36 = arith.mulf %32, %35 : vector<8x1xf32>
    %37 = arith.mulf %34, %34 : vector<8x1xf32>
    %38 = arith.subf %36, %37 : vector<8x1xf32>
    %cst_16 = arith.constant 0.000000e+00 : f32
    %39 = vector.broadcast %cst_16 : f32 to vector<8x1xf32>
    %40 = arith.maximumf %38, %39 : vector<8x1xf32>
    %cst_17 = arith.constant 9.99999974E-6 : f32
    %41 = vector.broadcast %cst_17 : f32 to vector<8x1xf32>
    %42 = arith.addf %40, %41 : vector<8x1xf32>
    %43 = math.rsqrt %42 : vector<8x1xf32>
    %44 = vector.broadcast %34 : vector<8x1xf32> to vector<8x256xf32>
    %45 = arith.subf %27, %44 : vector<8x256xf32>
    %46 = vector.broadcast %43 : vector<8x1xf32> to vector<8x256xf32>
    %47 = arith.mulf %45, %46 : vector<8x256xf32>
    %48 = vector.extract_strided_slice %2 {offsets = [2, 0], sizes = [1, 256], strides = [1, 1]} : vector<4x256xf32> to vector<1x256xf32>
    %49 = vector.broadcast %48 : vector<1x256xf32> to vector<8x256xf32>
    %50 = arith.mulf %47, %49 : vector<8x256xf32>
    %51 = vector.extract_strided_slice %2 {offsets = [3, 0], sizes = [1, 256], strides = [1, 1]} : vector<4x256xf32> to vector<1x256xf32>
    %52 = vector.broadcast %51 : vector<1x256xf32> to vector<8x256xf32>
    %53 = arith.addf %50, %52 : vector<8x256xf32>
    %c0_18 = arith.constant 0 : index
    %c0_19 = arith.constant 0 : index
    %54 = vector.load %arg5[%c0_18, %c0_19] : memref<8x256xf32, #tpu.memory_space<vmem>>, vector<8x256xf32>
    tpu.vector_store %arg5[%c0_18, %c0_19], %53 {strides = array<i32>} : memref<8x256xf32, #tpu.memory_space<vmem>>, vector<8x256xf32>,
    return
  }
  func.func @transform_0(%arg0: i32) -> (i32, i32) {
    %c0_i32 = arith.constant 0 : i32
    %c0_i32_0 = arith.constant 0 : i32
    return %arg0, %c0_i32 : i32, i32
  }
  func.func @transform_1(%arg0: i32) -> (i32, i32) {
    %c0_i32 = arith.constant 0 : i32
    %c0_i32_0 = arith.constant 0 : i32
    %c0_i32_1 = arith.constant 0 : i32
    return %c0_i32, %c0_i32_0 : i32, i32
  }
  func.func @transform_2(%arg0: i32) -> (i32, i32) {
    %c0_i32 = arith.constant 0 : i32
    %c0_i32_0 = arith.constant 0 : i32
    %c0_i32_1 = arith.constant 0 : i32
    return %c0_i32, %c0_i32_0 : i32, i32
  }
  func.func @transform_3(%arg0: i32) -> (i32, i32) {
    %c0_i32 = arith.constant 0 : i32
    %c0_i32_0 = arith.constant 0 : i32
    %c0_i32_1 = arith.constant 0 : i32
    return %c0_i32, %c0_i32_0 : i32, i32
  }
  func.func @transform_4(%arg0: i32) -> (i32, i32) {
    %c0_i32 = arith.constant 0 : i32
    %c0_i32_0 = arith.constant 0 : i32
    return %arg0, %c0_i32 : i32, i32
  }
}

</mosaic_0001>

<llo_original>
// kernel: tpu_custom_call.1
$region0: #{tpu_custom_call.1}
  #allocation0 [shape = 'u32[]', space=smem, size = 0x4, offset = 0x4, fixed_abs, tag = 'smem constant byte address 0x4 - core index']
  #allocation1 [shape = 'u32[72,128]{1,0:T(1,128)}', space=vmem, size = 0x9000, scoped, tag = 'internal scratch']
  %s0 = inlined_call_operand.hbm [shape: f32[8,512], index: 0, kind: input, shape index: {}]
  %s1 = inlined_call_operand.hbm [shape: bf16[512,256], index: 1, kind: input, shape index: {}]
  %s2 = inlined_call_operand.hbm [shape: bf16[256,256], index: 2, kind: input, shape index: {}]
  %s3 = inlined_call_operand.hbm [shape: f32[4,256], index: 3, kind: input, shape index: {}]
  %s4 = inlined_call_operand.hbm [shape: f32[8,256], index: 4, kind: output, shape index: {}]
  %s5 = sld [smem:[#allocation0]]
  $region42: #{tpu_custom_call.1} parent=0
    _
  %s7 = ssub.s32 1, %s5
  %s8 = scalar_select 0, %s7, %s5
  $region1: #{tpu_custom_call.1} parent=0
    #allocation2 [shape = 'u8[16384]{0}', space=vmem, size = 0x4000, scoped, tag = 'input window, operand 0, single buffered']
    #allocation3 [shape = 's32[1]{0}', space=sflag, size = 0x4, scoped, tag = 'scoped memory for tpu_custom_call.1']
    #allocation4 [shape = 's32[1]{0}', space=sflag, size = 0x4, scoped, tag = 'scoped memory for tpu_custom_call.1']
    #allocation5 [shape = 'u8[262144]{0}', space=vmem, size = 0x40000, scoped, tag = 'input window, operand 1, single buffered']
    #allocation6 [shape = 's32[1]{0}', space=sflag, size = 0x4, scoped, tag = 'scoped memory for tpu_custom_call.1']
    #allocation7 [shape = 'u8[131072]{0}', space=vmem, size = 0x20000, scoped, tag = 'input window, operand 2, single buffered']
    #allocation8 [shape = 'u8[4096]{0}', space=vmem, size = 0x1000, scoped, tag = 'input window, operand 3, single buffered']
    #allocation9 [shape = 's32[1]{0}', space=sflag, size = 0x4, scoped, tag = 'scoped memory for tpu_custom_call.1']
    #allocation10 [shape = 'u8[8192]{0}', space=vmem, size = 0x2000, scoped, tag = 'output window, operand 0, single buffered']
    %9 = vsyncpa [#allocation3], 0
    %10 = vsyncpa [#allocation6], 0
    %11 = vsyncpa [#allocation9], 0
    %12 = vsyncpa [#allocation4], 0
    // Predicated region
    $region2: #{tpu_custom_call.1} parent=1 // pred_check
      _
    $region3: #{tpu_custom_call.1} parent=1 // pred_check_branch
      %14 = sbr.rel (0) target = $region5
    $region4: #{tpu_custom_call.1} parent=1 // pred_region
      %16 = vsyncadd [#allocation3], 0
      %s18 = sshll.u32 %s0, 4
      %s19 = int_to_ptr.hbm [resolvable:$true] %s18
      %s20 = sshll.u32 [#allocation2], 4
      %s21 = int_to_ptr.vmem [resolvable:$true] %s20
      %23 = dma.hbm_to_vmem [thread:$0]  %s19, 512, %s21, [#allocation3]
    $region5: #{tpu_custom_call.1} parent=1 // pred_fallthru
      _
    // Predicated region
    $region6: #{tpu_custom_call.1} parent=1 // pred_check
      _
    $region7: #{tpu_custom_call.1} parent=1 // pred_check_branch
      %25 = sbr.rel (0) target = $region9
    $region8: #{tpu_custom_call.1} parent=1 // pred_region
      %27 = vsyncadd [#allocation6], 0
      %s28 = sshll.u32 %s1, 4
      %s29 = int_to_ptr.hbm [resolvable:$true] %s28
      %s30 = sshll.u32 [#allocation5], 4
      %s31 = int_to_ptr.vmem [resolvable:$true] %s30
      %36 = dma.hbm_to_vmem [thread:$0]  %s29, 8192, %s31, [#allocation6], 128, 128, 8
    $region9: #{tpu_custom_call.1} parent=1 // pred_fallthru
      _
    // Predicated region
    $region10: #{tpu_custom_call.1} parent=1 // pred_check
      _
    $region11: #{tpu_custom_call.1} parent=1 // pred_check_branch
      %38 = sbr.rel (0) target = $region13
    $region12: #{tpu_custom_call.1} parent=1 // pred_region
      %40 = vsyncadd [#allocation6], 0
      %s41 = sshll.u32 %s2, 4
      %s42 = int_to_ptr.hbm [resolvable:$true] %s41
      %s43 = sshll.u32 [#allocation7], 4
      %s44 = int_to_ptr.vmem [resolvable:$true] %s43
      %49 = dma.hbm_to_vmem [thread:$0]  %s42, 4096, %s44, [#allocation6], 128, 128, 8
    $region13: #{tpu_custom_call.1} parent=1 // pred_fallthru
      _
    // Predicated region
    $region14: #{tpu_custom_call.1} parent=1 // pred_check
      _
    $region15: #{tpu_custom_call.1} parent=1 // pred_check_branch
      %51 = sbr.rel (0) target = $region17
    $region16: #{tpu_custom_call.1} parent=1 // pred_region
      %53 = vsyncadd [#allocation9], 0
      %s55 = sshll.u32 %s3, 4
      %s56 = int_to_ptr.hbm [resolvable:$true] %s55
      %s57 = sshll.u32 [#allocation8], 4
      %s58 = int_to_ptr.vmem [resolvable:$true] %s57
      %60 = dma.hbm_to_vmem [thread:$0]  %s56, 128, %s58, [#allocation9]
    $region17: #{tpu_custom_call.1} parent=1 // pred_fallthru
      _
    // Predicated region
    $region18: #{tpu_custom_call.1} parent=1 // pred_check
      _
    $region19: #{tpu_custom_call.1} parent=1 // pred_check_branch
      %62 = sbr.rel (0) target = $region21
    $region20: #{tpu_custom_call.1} parent=1 // pred_region
      %64 = dma.done [#allocation3], 512
    $region21: #{tpu_custom_call.1} parent=1 // pred_fallthru
      _
    // Predicated region
    $region22: #{tpu_custom_call.1} parent=1 // pred_check
      _
    $region23: #{tpu_custom_call.1} parent=1 // pred_check_branch
      %66 = sbr.rel (0) target = $region25
    $region24: #{tpu_custom_call.1} parent=1 // pred_region
      %68 = dma.done [#allocation6], 8192
    $region25: #{tpu_custom_call.1} parent=1 // pred_fallthru
      _
    // Predicated region
    $region26: #{tpu_custom_call.1} parent=1 // pred_check
      _
    $region27: #{tpu_custom_call.1} parent=1 // pred_check_branch
      %70 = sbr.rel (0) target = $region29
    $region28: #{tpu_custom_call.1} parent=1 // pred_region
      %72 = dma.done [#allocation6], 4096
    $region29: #{tpu_custom_call.1} parent=1 // pred_fallthru
      _
    // Predicated region
    $region30: #{tpu_custom_call.1} parent=1 // pred_check
      _
    $region31: #{tpu_custom_call.1} parent=1 // pred_check_branch
      %74 = sbr.rel (0) target = $region33
    $region32: #{tpu_custom_call.1} parent=1 // pred_region
      %76 = dma.done [#allocation9], 128
    $region33: #{tpu_custom_call.1} parent=1 // pred_fallthru
      _
    %v77 = vld [vmem:[#allocation2] sm:$0xff]
    %v78 = vld [vmem:[#allocation2 + $0x8] sm:$0xff]
    %v79 = vld [vmem:[#allocation2 + $0x10] sm:$0xff]
    %v80 = vld [vmem:[#allocation2 + $0x18] sm:$0xff]
    %v81 = vpack.c.bf16 %v77, %v77
    %v82 = vpack.c.bf16 %v78, %v78
    %v83 = vpack.c.bf16 %v79, %v79
    %v84 = vpack.c.bf16 %v80, %v80
    %v85 = vld [vmem:[#allocation8] sm:$0xff]
    %v86 = vld [vmem:[#allocation5] sm:$0xff]
    %v87 = vld [vmem:[#allocation5 + $0x8] sm:$0xff]
    %v88 = vld [vmem:[#allocation5 + $0x10] sm:$0xff]
    %v89 = vld [vmem:[#allocation5 + $0x18] sm:$0xff]
    %v90 = vld [vmem:[#allocation5 + $0x20] sm:$0xff]
    %v91 = vld [vmem:[#allocation5 + $0x28] sm:$0xff]
    %v92 = vld [vmem:[#allocation5 + $0x30] sm:$0xff]
    %v93 = vld [vmem:[#allocation5 + $0x38] sm:$0xff]
    %v94 = vld [vmem:[#allocation5 + $0x40] sm:$0xff]
    %v95 = vld [vmem:[#allocation5 + $0x48] sm:$0xff]
    %v96 = vld [vmem:[#allocation5 + $0x50] sm:$0xff]
    %v97 = vld [vmem:[#allocation5 + $0x58] sm:$0xff]
    %v98 = vld [vmem:[#allocation5 + $0x60] sm:$0xff]
    %v99 = vld [vmem:[#allocation5 + $0x68] sm:$0xff]
    %v100 = vld [vmem:[#allocation5 + $0x70] sm:$0xff]
    %v101 = vld [vmem:[#allocation5 + $0x78] sm:$0xff]
    %v102 = vld [vmem:[#allocation5 + $0x80] sm:$0xff]
    %v103 = vld [vmem:[#allocation5 + $0x88] sm:$0xff]
    %v104 = vld [vmem:[#allocation5 + $0x90] sm:$0xff]
    %v105 = vld [vmem:[#allocation5 + $0x98] sm:$0xff]
    %v106 = vld [vmem:[#allocation5 + $0xa0] sm:$0xff]
    %v107 = vld [vmem:[#allocation5 + $0xa8] sm:$0xff]
    %v108 = vld [vmem:[#allocation5 + $0xb0] sm:$0xff]
    %v109 = vld [vmem:[#allocation5 + $0xb8] sm:$0xff]
    %v110 = vld [vmem:[#allocation5 + $0xc0] sm:$0xff]
    %v111 = vld [vmem:[#allocation5 + $0xc8] sm:$0xff]
    %v112 = vld [vmem:[#allocation5 + $0xd0] sm:$0xff]
    %v113 = vld [vmem:[#allocation5 + $0xd8] sm:$0xff]
    %v114 = vld [vmem:[#allocation5 + $0xe0] sm:$0xff]
    %v115 = vld [vmem:[#allocation5 + $0xe8] sm:$0xff]
    %v116 = vld [vmem:[#allocation5 + $0xf0] sm:$0xff]
    %v117 = vld [vmem:[#allocation5 + $0xf8] sm:$0xff]
    %v118 = vld [vmem:[#allocation5 + $0x100] sm:$0xff]
    %v119 = vld [vmem:[#allocation5 + $0x108] sm:$0xff]
    %v120 = vld [vmem:[#allocation5 + $0x110] sm:$0xff]
    %v121 = vld [vmem:[#allocation5 + $0x118] sm:$0xff]
    %v122 = vld [vmem:[#allocation5 + $0x120] sm:$0xff]
    %v123 = vld [vmem:[#allocation5 + $0x128] sm:$0xff]
    %v124 = vld [vmem:[#allocation5 + $0x130] sm:$0xff]
    %v125 = vld [vmem:[#allocation5 + $0x138] sm:$0xff]
    %v126 = vld [vmem:[#allocation5 + $0x140] sm:$0xff]
    %v127 = vld [vmem:[#allocation5 + $0x148] sm:$0xff]
    %v128 = vld [vmem:[#allocation5 + $0x150] sm:$0xff]
    %v129 = vld [vmem:[#allocation5 + $0x158] sm:$0xff]
    %v130 = vld [vmem:[#allocation5 + $0x160] sm:$0xff]
    %v131 = vld [vmem:[#allocation5 + $0x168] sm:$0xff]
    %v132 = vld [vmem:[#allocation5 + $0x170] sm:$0xff]
    %v133 = vld [vmem:[#allocation5 + $0x178] sm:$0xff]
    %v134 = vld [vmem:[#allocation5 + $0x180] sm:$0xff]
    %v135 = vld [vmem:[#allocation5 + $0x188] sm:$0xff]
    %v136 = vld [vmem:[#allocation5 + $0x190] sm:$0xff]
    %v137 = vld [vmem:[#allocation5 + $0x198] sm:$0xff]
    %v138 = vld [vmem:[#allocation5 + $0x1a0] sm:$0xff]
    %v139 = vld [vmem:[#allocation5 + $0x1a8] sm:$0xff]
    %v140 = vld [vmem:[#allocation5 + $0x1b0] sm:$0xff]
    %v141 = vld [vmem:[#allocation5 + $0x1b8] sm:$0xff]
    %v142 = vld [vmem:[#allocation5 + $0x1c0] sm:$0xff]
    %v143 = vld [vmem:[#allocation5 + $0x1c8] sm:$0xff]
    %v144 = vld [vmem:[#allocation5 + $0x1d0] sm:$0xff]
    %v145 = vld [vmem:[#allocation5 + $0x1d8] sm:$0xff]
    %v146 = vld [vmem:[#allocation5 + $0x1e0] sm:$0xff]
    %v147 = vld [vmem:[#allocation5 + $0x1e8] sm:$0xff]
    %v148 = vld [vmem:[#allocation5 + $0x1f0] sm:$0xff]
    %v149 = vld [vmem:[#allocation5 + $0x1f8] sm:$0xff]
    %v151 = vperm.slane %v85, 0
    %v152 = vperm.slane %v85, 4
    %v155 = vperm.slane %v151, 0
    %v156 = vperm.slane %v152, 0
    %v221 = vunpack.c.l.b16 %v86
    %v222 = vunpack.c.h.b16 %v86
    %v223 = vunpack.c.l.b16 %v87
    %v224 = vunpack.c.h.b16 %v87
    %v225 = vunpack.c.l.b16 %v88
    %v226 = vunpack.c.h.b16 %v88
    %v227 = vunpack.c.l.b16 %v89
    %v228 = vunpack.c.h.b16 %v89
    %v229 = vunpack.c.l.b16 %v90
    %v230 = vunpack.c.h.b16 %v90
    %v231 = vunpack.c.l.b16 %v91
    %v232 = vunpack.c.h.b16 %v91
    %v233 = vunpack.c.l.b16 %v92
    %v234 = vunpack.c.h.b16 %v92
    %v235 = vunpack.c.l.b16 %v93
    %v236 = vunpack.c.h.b16 %v93
    %v237 = vunpack.c.l.b16 %v94
    %v238 = vunpack.c.h.b16 %v94
    %v239 = vunpack.c.l.b16 %v95
    %v240 = vunpack.c.h.b16 %v95
    %v241 = vunpack.c.l.b16 %v96
    %v242 = vunpack.c.h.b16 %v96
    %v243 = vunpack.c.l.b16 %v97
    %v244 = vunpack.c.h.b16 %v97
    %v245 = vunpack.c.l.b16 %v98
    %v246 = vunpack.c.h.b16 %v98
    %v247 = vunpack.c.l.b16 %v99
    %v248 = vunpack.c.h.b16 %v99
    %v249 = vunpack.c.l.b16 %v100
    %v250 = vunpack.c.h.b16 %v100
    %v251 = vunpack.c.l.b16 %v101
    %v252 = vunpack.c.h.b16 %v101
    %v253 = vunpack.c.l.b16 %v102
    %v254 = vunpack.c.h.b16 %v102
    %v255 = vunpack.c.l.b16 %v103
    %v256 = vunpack.c.h.b16 %v103
    %v257 = vunpack.c.l.b16 %v104
    %v258 = vunpack.c.h.b16 %v104
    %v259 = vunpack.c.l.b16 %v105
    %v260 = vunpack.c.h.b16 %v105
    %v261 = vunpack.c.l.b16 %v106
    %v262 = vunpack.c.h.b16 %v106
    %v263 = vunpack.c.l.b16 %v107
    %v264 = vunpack.c.h.b16 %v107
    %v265 = vunpack.c.l.b16 %v108
    %v266 = vunpack.c.h.b16 %v108
    %v267 = vunpack.c.l.b16 %v109
    %v268 = vunpack.c.h.b16 %v109
    %v269 = vunpack.c.l.b16 %v110
    %v270 = vunpack.c.h.b16 %v110
    %v271 = vunpack.c.l.b16 %v111
    %v272 = vunpack.c.h.b16 %v111
    %v273 = vunpack.c.l.b16 %v112
    %v274 = vunpack.c.h.b16 %v112
    %v275 = vunpack.c.l.b16 %v113
    %v276 = vunpack.c.h.b16 %v113
    %v277 = vunpack.c.l.b16 %v114
    %v278 = vunpack.c.h.b16 %v114
    %v279 = vunpack.c.l.b16 %v115
    %v280 = vunpack.c.h.b16 %v115
    %v281 = vunpack.c.l.b16 %v116
    %v282 = vunpack.c.h.b16 %v116
    %v283 = vunpack.c.l.b16 %v117
    %v284 = vunpack.c.h.b16 %v117
    %v285 = vunpack.c.l.b16 %v118
    %v286 = vunpack.c.h.b16 %v118
    %v287 = vunpack.c.l.b16 %v119
    %v288 = vunpack.c.h.b16 %v119
    %v289 = vunpack.c.l.b16 %v120
    %v290 = vunpack.c.h.b16 %v120
    %v291 = vunpack.c.l.b16 %v121
    %v292 = vunpack.c.h.b16 %v121
    %v293 = vunpack.c.l.b16 %v122
    %v294 = vunpack.c.h.b16 %v122
    %v295 = vunpack.c.l.b16 %v123
    %v296 = vunpack.c.h.b16 %v123
    %v297 = vunpack.c.l.b16 %v124
    %v298 = vunpack.c.h.b16 %v124
    %v299 = vunpack.c.l.b16 %v125
    %v300 = vunpack.c.h.b16 %v125
    %v301 = vunpack.c.l.b16 %v126
    %v302 = vunpack.c.h.b16 %v126
    %v303 = vunpack.c.l.b16 %v127
    %v304 = vunpack.c.h.b16 %v127
    %v305 = vunpack.c.l.b16 %v128
    %v306 = vunpack.c.h.b16 %v128
    %v307 = vunpack.c.l.b16 %v129
    %v308 = vunpack.c.h.b16 %v129
    %v309 = vunpack.c.l.b16 %v130
    %v310 = vunpack.c.h.b16 %v130
    %v311 = vunpack.c.l.b16 %v131
    %v312 = vunpack.c.h.b16 %v131
    %v313 = vunpack.c.l.b16 %v132
    %v314 = vunpack.c.h.b16 %v132
    %v315 = vunpack.c.l.b16 %v133
    %v316 = vunpack.c.h.b16 %v133
    %v317 = vunpack.c.l.b16 %v134
    %v318 = vunpack.c.h.b16 %v134
    %v319 = vunpack.c.l.b16 %v135
    %v320 = vunpack.c.h.b16 %v135
    %v321 = vunpack.c.l.b16 %v136
    %v322 = vunpack.c.h.b16 %v136
    %v323 = vunpack.c.l.b16 %v137
    %v324 = vunpack.c.h.b16 %v137
    %v325 = vunpack.c.l.b16 %v138
    %v326 = vunpack.c.h.b16 %v138
    %v327 = vunpack.c.l.b16 %v139
    %v328 = vunpack.c.h.b16 %v139
    %v329 = vunpack.c.l.b16 %v140
    %v330 = vunpack.c.h.b16 %v140
    %v331 = vunpack.c.l.b16 %v141
    %v332 = vunpack.c.h.b16 %v141
    %v333 = vunpack.c.l.b16 %v142
    %v334 = vunpack.c.h.b16 %v142
    %v335 = vunpack.c.l.b16 %v143
    %v336 = vunpack.c.h.b16 %v143
    %v337 = vunpack.c.l.b16 %v144
    %v338 = vunpack.c.h.b16 %v144
    %v339 = vunpack.c.l.b16 %v145
    %v340 = vunpack.c.h.b16 %v145
    %v341 = vunpack.c.l.b16 %v146
    %v342 = vunpack.c.h.b16 %v146
    %v343 = vunpack.c.l.b16 %v147
    %v344 = vunpack.c.h.b16 %v147
    %v345 = vunpack.c.l.b16 %v148
    %v346 = vunpack.c.h.b16 %v148
    %v347 = vunpack.c.l.b16 %v149
    %v348 = vunpack.c.h.b16 %v149
    %v349 = vpack.c.b16 %v223, %v221
    %v350 = vpack.c.b16 %v224, %v222
    %v351 = vpack.c.b16 %v227, %v225
    %v352 = vpack.c.b16 %v228, %v226
    %v353 = vpack.c.b16 %v231, %v229
    %v354 = vpack.c.b16 %v232, %v230
    %v355 = vpack.c.b16 %v235, %v233
    %v356 = vpack.c.b16 %v236, %v234
    %v357 = vpack.c.b16 %v239, %v237
    %v358 = vpack.c.b16 %v240, %v238
    %v359 = vpack.c.b16 %v243, %v241
    %v360 = vpack.c.b16 %v244, %v242
    %v361 = vpack.c.b16 %v247, %v245
    %v362 = vpack.c.b16 %v248, %v246
    %v363 = vpack.c.b16 %v251, %v249
    %v364 = vpack.c.b16 %v252, %v250
    %v365 = vpack.c.b16 %v255, %v253
    %v366 = vpack.c.b16 %v256, %v254
    %v367 = vpack.c.b16 %v259, %v257
    %v368 = vpack.c.b16 %v260, %v258
    %v369 = vpack.c.b16 %v263, %v261
    %v370 = vpack.c.b16 %v264, %v262
    %v371 = vpack.c.b16 %v267, %v265
    %v372 = vpack.c.b16 %v268, %v266
    %v373 = vpack.c.b16 %v271, %v269
    %v374 = vpack.c.b16 %v272, %v270
    %v375 = vpack.c.b16 %v275, %v273
    %v376 = vpack.c.b16 %v276, %v274
    %v377 = vpack.c.b16 %v279, %v277
    %v378 = vpack.c.b16 %v280, %v278
    %v379 = vpack.c.b16 %v283, %v281
    %v380 = vpack.c.b16 %v284, %v282
    %v381 = vpack.c.b16 %v287, %v285
    %v382 = vpack.c.b16 %v288, %v286
    %v383 = vpack.c.b16 %v291, %v289
    %v384 = vpack.c.b16 %v292, %v290
    %v385 = vpack.c.b16 %v295, %v293
    %v386 = vpack.c.b16 %v296, %v294
    %v387 = vpack.c.b16 %v299, %v297
    %v388 = vpack.c.b16 %v300, %v298
    %v389 = vpack.c.b16 %v303, %v301
    %v390 = vpack.c.b16 %v304, %v302
    %v391 = vpack.c.b16 %v307, %v305
    %v392 = vpack.c.b16 %v308, %v306
    %v393 = vpack.c.b16 %v311, %v309
    %v394 = vpack.c.b16 %v312, %v310
    %v395 = vpack.c.b16 %v315, %v313
    %v396 = vpack.c.b16 %v316, %v314
    %v397 = vpack.c.b16 %v319, %v317
    %v398 = vpack.c.b16 %v320, %v318
    %v399 = vpack.c.b16 %v323, %v321
    %v400 = vpack.c.b16 %v324, %v322
    %v401 = vpack.c.b16 %v327, %v325
    %v402 = vpack.c.b16 %v328, %v326
    %v403 = vpack.c.b16 %v331, %v329
    %v404 = vpack.c.b16 %v332, %v330
    %v405 = vpack.c.b16 %v335, %v333
    %v406 = vpack.c.b16 %v336, %v334
    %v407 = vpack.c.b16 %v339, %v337
    %v408 = vpack.c.b16 %v340, %v338
    %v409 = vpack.c.b16 %v343, %v341
    %v410 = vpack.c.b16 %v344, %v342
    %v411 = vpack.c.b16 %v347, %v345
    %v412 = vpack.c.b16 %v348, %v346
    %477 = vmatpush.bf16.msra.mxu0 %v363
    %478 = vmatpush.bf16.msra.mxu0 %v361
    %479 = vmatpush.bf16.msra.mxu0 %v359
    %480 = vmatpush.bf16.msra.mxu0 %v357
    %481 = vmatpush.bf16.msra.mxu0 %v355
    %482 = vmatpush.bf16.msra.mxu0 %v353
    %483 = vmatpush.bf16.msra.mxu0 %v351
    %484 = vmatpush.bf16.msra.mxu0 %v349
    %485 = vmatmul.bf16.gmra.mxu0 %v81
    %v486 = vpop.f32.mrf.mxu0
    %v487 = vadd.f32 %v155, %v486
    %v488 = vpop.f32.mrf.mxu0
    %489 = vdwg.mxu0
    %490 = vmatpush.bf16.msra.mxu0 %v379
    %491 = vmatpush.bf16.msra.mxu0 %v377
    %492 = vmatpush.bf16.msra.mxu0 %v375
    %493 = vmatpush.bf16.msra.mxu0 %v373
    %494 = vmatpush.bf16.msra.mxu0 %v371
    %495 = vmatpush.bf16.msra.mxu0 %v369
    %496 = vmatpush.bf16.msra.mxu0 %v367
    %497 = vmatpush.bf16.msra.mxu0 %v365
    %498 = vmatmul.bf16.gmra.mxu0 %v82
    %v499 = vpop.f32.mrf.mxu0
    %v500 = vadd.f32 %v487, %v499
    %v501 = vpop.f32.mrf.mxu0
    %502 = vdwg.mxu0
    %503 = vmatpush.bf16.msra.mxu0 %v395
    %504 = vmatpush.bf16.msra.mxu0 %v393
    %505 = vmatpush.bf16.msra.mxu0 %v391
    %506 = vmatpush.bf16.msra.mxu0 %v389
    %507 = vmatpush.bf16.msra.mxu0 %v387
    %508 = vmatpush.bf16.msra.mxu0 %v385
    %509 = vmatpush.bf16.msra.mxu0 %v383
    %510 = vmatpush.bf16.msra.mxu0 %v381
    %511 = vmatmul.bf16.gmra.mxu0 %v83
    %v512 = vpop.f32.mrf.mxu0
    %v513 = vadd.f32 %v500, %v512
    %v514 = vpop.f32.mrf.mxu0
    %515 = vdwg.mxu0
    %516 = vmatpush.bf16.msra.mxu0 %v411
    %517 = vmatpush.bf16.msra.mxu0 %v409
    %518 = vmatpush.bf16.msra.mxu0 %v407
    %519 = vmatpush.bf16.msra.mxu0 %v405
    %520 = vmatpush.bf16.msra.mxu0 %v403
    %521 = vmatpush.bf16.msra.mxu0 %v401
    %522 = vmatpush.bf16.msra.mxu0 %v399
    %523 = vmatpush.bf16.msra.mxu0 %v397
    %524 = vmatmul.bf16.gmra.mxu0 %v84
    %v525 = vpop.f32.mrf.mxu0
    %v526 = vadd.f32 %v513, %v525
    %v527 = vpop.f32.mrf.mxu0
    %528 = vdwg.mxu0
    %529 = vmatpush.bf16.msra.mxu0 %v364
    %530 = vmatpush.bf16.msra.mxu0 %v362
    %531 = vmatpush.bf16.msra.mxu0 %v360
    %532 = vmatpush.bf16.msra.mxu0 %v358
    %533 = vmatpush.bf16.msra.mxu0 %v356
    %534 = vmatpush.bf16.msra.mxu0 %v354
    %535 = vmatpush.bf16.msra.mxu0 %v352
    %536 = vmatpush.bf16.msra.mxu0 %v350
    %537 = vmatmul.bf16.gmra.mxu0 %v81
    %v538 = vpop.f32.mrf.mxu0
    %v539 = vadd.f32 %v156, %v538
    %v540 = vpop.f32.mrf.mxu0
    %541 = vdwg.mxu0
    %542 = vmatpush.bf16.msra.mxu0 %v380
    %543 = vmatpush.bf16.msra.mxu0 %v378
    %544 = vmatpush.bf16.msra.mxu0 %v376
    %545 = vmatpush.bf16.msra.mxu0 %v374
    %546 = vmatpush.bf16.msra.mxu0 %v372
    %547 = vmatpush.bf16.msra.mxu0 %v370
    %548 = vmatpush.bf16.msra.mxu0 %v368
    %549 = vmatpush.bf16.msra.mxu0 %v366
    %550 = vmatmul.bf16.gmra.mxu0 %v82
    %v551 = vpop.f32.mrf.mxu0
    %v552 = vadd.f32 %v539, %v551
    %v553 = vpop.f32.mrf.mxu0
    %554 = vdwg.mxu0
    %555 = vmatpush.bf16.msra.mxu0 %v396
    %556 = vmatpush.bf16.msra.mxu0 %v394
    %557 = vmatpush.bf16.msra.mxu0 %v392
    %558 = vmatpush.bf16.msra.mxu0 %v390
    %559 = vmatpush.bf16.msra.mxu0 %v388
    %560 = vmatpush.bf16.msra.mxu0 %v386
    %561 = vmatpush.bf16.msra.mxu0 %v384
    %562 = vmatpush.bf16.msra.mxu0 %v382
    %563 = vmatmul.bf16.gmra.mxu0 %v83
    %v564 = vpop.f32.mrf.mxu0
    %v565 = vadd.f32 %v552, %v564
    %v566 = vpop.f32.mrf.mxu0
    %567 = vdwg.mxu0
    %568 = vmatpush.bf16.msra.mxu0 %v412
    %569 = vmatpush.bf16.msra.mxu0 %v410
    %570 = vmatpush.bf16.msra.mxu0 %v408
    %571 = vmatpush.bf16.msra.mxu0 %v406
    %572 = vmatpush.bf16.msra.mxu0 %v404
    %573 = vmatpush.bf16.msra.mxu0 %v402
    %574 = vmatpush.bf16.msra.mxu0 %v400
    %575 = vmatpush.bf16.msra.mxu0 %v398
    %576 = vmatmul.bf16.gmra.mxu0 %v84
    %v577 = vpop.f32.mrf.mxu0
    %v578 = vadd.f32 %v565, %v577
    %v579 = vpop.f32.mrf.mxu0
    %580 = vdwg.mxu0
    %v581 = vmul.f32 %v526, 0.044715
    %v582 = vmul.f32 %v578, 0.044715
    %v583 = vmul.f32 %v581, %v526
    %v584 = vmul.f32 %v582, %v578
    %v585 = vmul.f32 %v583, %v526
    %v586 = vmul.f32 %v584, %v578
    %v587 = vadd.f32 %v526, %v585
    %v588 = vadd.f32 %v578, %v586
    %v589 = vmul.f32 %v587, 0.7978846
    %v590 = vmul.f32 %v588, 0.7978846
    %v591 = vmul.f32 %v526, 0.5
    %v592 = vmul.f32 %v578, 0.5
    %v593 = vtanh.pop %v589
    %v594 = vtanh.pop %v590
    %v595 = vadd.f32 %v593, 1.0
    %v596 = vadd.f32 %v594, 1.0
    %v597 = vmul.f32 %v591, %v595
    %v598 = vmul.f32 %v592, %v596
    %v599 = vpack.c.bf16 %v597, %v597
    %v600 = vpack.c.bf16 %v598, %v598
    %v601 = vld [vmem:[#allocation7] sm:$0xff]
    %v602 = vld [vmem:[#allocation7 + $0x8] sm:$0xff]
    %v603 = vld [vmem:[#allocation7 + $0x10] sm:$0xff]
    %v604 = vld [vmem:[#allocation7 + $0x18] sm:$0xff]
    %v605 = vld [vmem:[#allocation7 + $0x20] sm:$0xff]
    %v606 = vld [vmem:[#allocation7 + $0x28] sm:$0xff]
    %v607 = vld [vmem:[#allocation7 + $0x30] sm:$0xff]
    %v608 = vld [vmem:[#allocation7 + $0x38] sm:$0xff]
    %v609 = vld [vmem:[#allocation7 + $0x40] sm:$0xff]
    %v610 = vld [vmem:[#allocation7 + $0x48] sm:$0xff]
    %v611 = vld [vmem:[#allocation7 + $0x50] sm:$0xff]
    %v612 = vld [vmem:[#allocation7 + $0x58] sm:$0xff]
    %v613 = vld [vmem:[#allocation7 + $0x60] sm:$0xff]
    %v614 = vld [vmem:[#allocation7 + $0x68] sm:$0xff]
    %v615 = vld [vmem:[#allocation7 + $0x70] sm:$0xff]
    %v616 = vld [vmem:[#allocation7 + $0x78] sm:$0xff]
    %v617 = vld [vmem:[#allocation7 + $0x80] sm:$0xff]
    %v618 = vld [vmem:[#allocation7 + $0x88] sm:$0xff]
    %v619 = vld [vmem:[#allocation7 + $0x90] sm:$0xff]
    %v620 = vld [vmem:[#allocation7 + $0x98] sm:$0xff]
    %v621 = vld [vmem:[#allocation7 + $0xa0] sm:$0xff]
    %v622 = vld [vmem:[#allocation7 + $0xa8] sm:$0xff]
    %v623 = vld [vmem:[#allocation7 + $0xb0] sm:$0xff]
    %v624 = vld [vmem:[#allocation7 + $0xb8] sm:$0xff]
    %v625 = vld [vmem:[#allocation7 + $0xc0] sm:$0xff]
    %v626 = vld [vmem:[#allocation7 + $0xc8] sm:$0xff]
    %v627 = vld [vmem:[#allocation7 + $0xd0] sm:$0xff]
    %v628 = vld [vmem:[#allocation7 + $0xd8] sm:$0xff]
    %v629 = vld [vmem:[#allocation7 + $0xe0] sm:$0xff]
    %v630 = vld [vmem:[#allocation7 + $0xe8] sm:$0xff]
    %v631 = vld [vmem:[#allocation7 + $0xf0] sm:$0xff]
    %v632 = vld [vmem:[#allocation7 + $0xf8] sm:$0xff]
    %v633 = vperm.slane %v85, 1
    %v634 = vperm.slane %v85, 5
    %v637 = vperm.slane %v633, 1
    %v638 = vperm.slane %v634, 1
    %v671 = vunpack.c.l.b16 %v601
    %v672 = vunpack.c.h.b16 %v601
    %v673 = vunpack.c.l.b16 %v602
    %v674 = vunpack.c.h.b16 %v602
    %v675 = vunpack.c.l.b16 %v603
    %v676 = vunpack.c.h.b16 %v603
    %v677 = vunpack.c.l.b16 %v604
    %v678 = vunpack.c.h.b16 %v604
    %v679 = vunpack.c.l.b16 %v605
    %v680 = vunpack.c.h.b16 %v605
    %v681 = vunpack.c.l.b16 %v606
    %v682 = vunpack.c.h.b16 %v606
    %v683 = vunpack.c.l.b16 %v607
    %v684 = vunpack.c.h.b16 %v607
    %v685 = vunpack.c.l.b16 %v608
    %v686 = vunpack.c.h.b16 %v608
    %v687 = vunpack.c.l.b16 %v609
    %v688 = vunpack.c.h.b16 %v609
    %v689 = vunpack.c.l.b16 %v610
    %v690 = vunpack.c.h.b16 %v610
    %v691 = vunpack.c.l.b16 %v611
    %v692 = vunpack.c.h.b16 %v611
    %v693 = vunpack.c.l.b16 %v612
    %v694 = vunpack.c.h.b16 %v612
    %v695 = vunpack.c.l.b16 %v613
    %v696 = vunpack.c.h.b16 %v613
    %v697 = vunpack.c.l.b16 %v614
    %v698 = vunpack.c.h.b16 %v614
    %v699 = vunpack.c.l.b16 %v615
    %v700 = vunpack.c.h.b16 %v615
    %v701 = vunpack.c.l.b16 %v616
    %v702 = vunpack.c.h.b16 %v616
    %v703 = vunpack.c.l.b16 %v617
    %v704 = vunpack.c.h.b16 %v617
    %v705 = vunpack.c.l.b16 %v618
    %v706 = vunpack.c.h.b16 %v618
    %v707 = vunpack.c.l.b16 %v619
    %v708 = vunpack.c.h.b16 %v619
    %v709 = vunpack.c.l.b16 %v620
    %v710 = vunpack.c.h.b16 %v620
    %v711 = vunpack.c.l.b16 %v621
    %v712 = vunpack.c.h.b16 %v621
    %v713 = vunpack.c.l.b16 %v622
    %v714 = vunpack.c.h.b16 %v622
    %v715 = vunpack.c.l.b16 %v623
    %v716 = vunpack.c.h.b16 %v623
    %v717 = vunpack.c.l.b16 %v624
    %v718 = vunpack.c.h.b16 %v624
    %v719 = vunpack.c.l.b16 %v625
    %v720 = vunpack.c.h.b16 %v625
    %v721 = vunpack.c.l.b16 %v626
    %v722 = vunpack.c.h.b16 %v626
    %v723 = vunpack.c.l.b16 %v627
    %v724 = vunpack.c.h.b16 %v627
    %v725 = vunpack.c.l.b16 %v628
    %v726 = vunpack.c.h.b16 %v628
    %v727 = vunpack.c.l.b16 %v629
    %v728 = vunpack.c.h.b16 %v629
    %v729 = vunpack.c.l.b16 %v630
    %v730 = vunpack.c.h.b16 %v630
    %v731 = vunpack.c.l.b16 %v631
    %v732 = vunpack.c.h.b16 %v631
    %v733 = vunpack.c.l.b16 %v632
    %v734 = vunpack.c.h.b16 %v632
    %v735 = vpack.c.b16 %v673, %v671
    %v736 = vpack.c.b16 %v674, %v672
    %v737 = vpack.c.b16 %v677, %v675
    %v738 = vpack.c.b16 %v678, %v676
    %v739 = vpack.c.b16 %v681, %v679
    %v740 = vpack.c.b16 %v682, %v680
    %v741 = vpack.c.b16 %v685, %v683
    %v742 = vpack.c.b16 %v686, %v684
    %v743 = vpack.c.b16 %v689, %v687
    %v744 = vpack.c.b16 %v690, %v688
    %v745 = vpack.c.b16 %v693, %v691
    %v746 = vpack.c.b16 %v694, %v692
    %v747 = vpack.c.b16 %v697, %v695
    %v748 = vpack.c.b16 %v698, %v696
    %v749 = vpack.c.b16 %v701, %v699
    %v750 = vpack.c.b16 %v702, %v700
    %v751 = vpack.c.b16 %v705, %v703
    %v752 = vpack.c.b16 %v706, %v704
    %v753 = vpack.c.b16 %v709, %v707
    %v754 = vpack.c.b16 %v710, %v708
    %v755 = vpack.c.b16 %v713, %v711
    %v756 = vpack.c.b16 %v714, %v712
    %v757 = vpack.c.b16 %v717, %v715
    %v758 = vpack.c.b16 %v718, %v716
    %v759 = vpack.c.b16 %v721, %v719
    %v760 = vpack.c.b16 %v722, %v720
    %v761 = vpack.c.b16 %v725, %v723
    %v762 = vpack.c.b16 %v726, %v724
    %v763 = vpack.c.b16 %v729, %v727
    %v764 = vpack.c.b16 %v730, %v728
    %v765 = vpack.c.b16 %v733, %v731
    %v766 = vpack.c.b16 %v734, %v732
    %799 = vmatpush.bf16.msra.mxu0 %v749
    %800 = vmatpush.bf16.msra.mxu0 %v747
    %801 = vmatpush.bf16.msra.mxu0 %v745
    %802 = vmatpush.bf16.msra.mxu0 %v743
    %803 = vmatpush.bf16.msra.mxu0 %v741
    %804 = vmatpush.bf16.msra.mxu0 %v739
    %805 = vmatpush.bf16.msra.mxu0 %v737
    %806 = vmatpush.bf16.msra.mxu0 %v735
    %807 = vmatmul.bf16.gmra.mxu0 %v599
    %v808 = vpop.f32.mrf.mxu0
    %v809 = vadd.f32 %v637, %v808
    %v810 = vpop.f32.mrf.mxu0
    %811 = vdwg.mxu0
    %812 = vmatpush.bf16.msra.mxu0 %v765
    %813 = vmatpush.bf16.msra.mxu0 %v763
    %814 = vmatpush.bf16.msra.mxu0 %v761
    %815 = vmatpush.bf16.msra.mxu0 %v759
    %816 = vmatpush.bf16.msra.mxu0 %v757
    %817 = vmatpush.bf16.msra.mxu0 %v755
    %818 = vmatpush.bf16.msra.mxu0 %v753
    %819 = vmatpush.bf16.msra.mxu0 %v751
    %820 = vmatmul.bf16.gmra.mxu0 %v600
    %v821 = vpop.f32.mrf.mxu0
    %v822 = vadd.f32 %v809, %v821
    %v823 = vpop.f32.mrf.mxu0
    %824 = vdwg.mxu0
    %825 = vmatpush.bf16.msra.mxu0 %v750
    %826 = vmatpush.bf16.msra.mxu0 %v748
    %827 = vmatpush.bf16.msra.mxu0 %v746
    %828 = vmatpush.bf16.msra.mxu0 %v744
    %829 = vmatpush.bf16.msra.mxu0 %v742
    %830 = vmatpush.bf16.msra.mxu0 %v740
    %831 = vmatpush.bf16.msra.mxu0 %v738
    %832 = vmatpush.bf16.msra.mxu0 %v736
    %833 = vmatmul.bf16.gmra.mxu0 %v599
    %v834 = vpop.f32.mrf.mxu0
    %v835 = vadd.f32 %v638, %v834
    %v836 = vpop.f32.mrf.mxu0
    %837 = vdwg.mxu0
    %838 = vmatpush.bf16.msra.mxu0 %v766
    %839 = vmatpush.bf16.msra.mxu0 %v764
    %840 = vmatpush.bf16.msra.mxu0 %v762
    %841 = vmatpush.bf16.msra.mxu0 %v760
    %842 = vmatpush.bf16.msra.mxu0 %v758
    %843 = vmatpush.bf16.msra.mxu0 %v756
    %844 = vmatpush.bf16.msra.mxu0 %v754
    %845 = vmatpush.bf16.msra.mxu0 %v752
    %846 = vmatmul.bf16.gmra.mxu0 %v600
    %v847 = vpop.f32.mrf.mxu0
    %v848 = vadd.f32 %v835, %v847
    %v849 = vpop.f32.mrf.mxu0
    %850 = vdwg.mxu0
    %v851 = vadd.f32 %v822, %v526
    %v852 = vadd.f32 %v848, %v578
    %v853 = vadd.f32 %v851, %v852
    %854 = vadd.xlane.f32.xlu0 %v853
    %v855 = vpop.xlane.xlu0 %854
    %v856 = vmul.f32 %v851, %v851
    %v857 = vmul.f32 %v852, %v852
    %v858 = vadd.f32 %v856, %v857
    %859 = vadd.xlane.f32.xlu0 %v858
    %v860 = vpop.xlane.xlu0 %859
    %v861 = vmul.f32 %v855, 0.00390625
    %v862 = vmul.f32 %v860, 0.00390625
    %v863 = vmul.f32 %v861, %v861
    %v864 = vsub.f32 %v862, %v863
    %v865 = vmax.f32 %v864, 0.0
    %v866 = vadd.f32 %v865, 1e-05
    %v867 = vrsqrt.pop %v866
    %v868 = vmul.f32 %v867, %v866
    %v869 = vmul.f32 %v868, %v867
    %v870 = vmul.f32 0.5, %v869
    %v871 = vsub.f32 1.5, %v870
    %v872 = vmul.f32 %v867, %v871
    %vm873 = vweird.f32 %v866
    %vm874 = vweird.f32 %v867
    %vm875 = vmor %vm873, %vm874
    %v876 = vsel %vm875, %v867, %v872
    %v877 = vsub.f32 %v851, %v861
    %v878 = vsub.f32 %v852, %v861
    %v879 = vmul.f32 %v877, %v876
    %v880 = vmul.f32 %v878, %v876
    %v881 = vperm.slane %v85, 2
    %v882 = vperm.slane %v85, 6
    %v885 = vperm.slane %v881, 2
    %v886 = vperm.slane %v882, 2
    %v887 = vmul.f32 %v879, %v885
    %v888 = vmul.f32 %v880, %v886
    %v889 = vperm.slane %v85, 3
    %v890 = vperm.slane %v85, 7
    %v893 = vperm.slane %v889, 3
    %v894 = vperm.slane %v890, 3
    %v895 = vadd.f32 %v887, %v893
    %v896 = vadd.f32 %v888, %v894
    %897 = vst [vmem:[#allocation10] sm:$0xff] %v895
    %898 = vst [vmem:[#allocation10 + $0x8] sm:$0xff] %v896
    // Predicated region
    $region34: #{tpu_custom_call.1} parent=1 // pred_check
      _
    $region35: #{tpu_custom_call.1} parent=1 // pred_check_branch
      %900 = sbr.rel (0) target = $region37
    $region36: #{tpu_custom_call.1} parent=1 // pred_region
      %902 = vsyncadd [#allocation4], 0
      %s904 = sshll.u32 [#allocation10], 4
      %s905 = int_to_ptr.vmem [resolvable:$true] %s904
      %s906 = sshll.u32 %s4, 4
      %s907 = int_to_ptr.hbm [resolvable:$true] %s906
      %909 = dma.vmem_to_hbm [thread:$0]  %s905, 256, %s907, [#allocation4]
    $region37: #{tpu_custom_call.1} parent=1 // pred_fallthru
      _
    // Predicated region
    $region38: #{tpu_custom_call.1} parent=1 // pred_check
      _
    $region39: #{tpu_custom_call.1} parent=1 // pred_check_branch
      %911 = sbr.rel (0) target = $region41
    $region40: #{tpu_custom_call.1} parent=1 // pred_region
      %913 = dma.done [#allocation4], 256
    $region41: #{tpu_custom_call.1} parent=1 // pred_fallthru
      _
    %914 = vsyncpa [#allocation3], 1
    %915 = vsyncpa [#allocation6], 1
    %916 = vsyncpa [#allocation9], 1
    %917 = vsyncpa [#allocation4], 1

</llo_original>
